<compile_context>
chip_gen: v6e
topology: v6e:2x2x1
jax: 0.10.0
libtpu: 0.0.40
codegen_flags: <defaults>
</compile_context>

<pallas_src>
import functools

import jax
import jax.numpy as jnp
from jax.experimental import pallas as pl
from jax.experimental.pallas import tpu as pltpu

_CORE_SPLIT = 2                 # leading "parallel" axis (v7x has 2 TCs; 1-TC chips loop)
_VMEM_LIMIT_BYTES = 32 << 20    # <= default scoped limit on v6e/v7x, raises v5e's 16 MiB
_INPUT_VMEM_BUDGET = 20 << 20   # inputs (double-buffered) + in-kernel temporaries
_MAX_BLOCK_ROWS = 8192


def _round_up(x, m):
    return ((x + m - 1) // m) * m


def _auto_block_rows(n, c, pred_itemsize):
    """Row block: big enough to amortize ~0.35 us/step overhead, small enough
    that double-buffered input tiles + elementwise temporaries fit the budget."""
    c_pad = _round_up(c, 128)
    # Double-buffered inputs: pred row + lane-padded (TN, 1) int32 target row.
    db_bytes_per_row = 2 * (c_pad * pred_itemsize + 128 * 4)
    # Not double-buffered but VMEM-resident: lane-iota scratch, select mask, picked f32.
    tmp_bytes_per_row = 3 * c_pad * 4
    tn = _INPUT_VMEM_BUDGET // (db_bytes_per_row + tmp_bytes_per_row)
    tn = max(8, min(int(tn), _MAX_BLOCK_ROWS))
    tn = (tn // 8) * 8
    return min(tn, _round_up(n, 8))


def _make_nll_kernel(total_rows, block_rows, num_classes, needs_row_mask):

    def kernel(pred_ref, target_ref, out_ref, acc_ref, col_ref):
        i = pl.program_id(0)                 # core split ("parallel")
        j = pl.program_id(1)                 # row-block reduction ("arbitrary")
        blocks_per_core = pl.num_programs(1)

        @pl.when(j == 0)
        def _init():
            acc_ref[...] = jnp.zeros_like(acc_ref)
            # Loop-invariant lane iota, generated once per core and reloaded
            # from VMEM each step (load slots are idle; VALU is the bottleneck).
            col_ref[...] = jax.lax.broadcasted_iota(
                jnp.int32, (block_rows, num_classes), 1)

        pred = pred_ref[...]                 # (TN, C), native dtype (f32 or bf16)
        tgt = target_ref[...]                # (TN, 1), int32
        col = col_ref[...]                   # (TN, C), int32
        sel = col == tgt                     # (TN, C), bool: one hit per valid row

        block_start = (i * blocks_per_core + j) * block_rows

        def _accumulate(mask):
            # Select in native dtype; upcast only the selected values.
            picked = jnp.where(mask, pred, 0.0)                       # (TN, C)
            part = jnp.sum(
                picked.astype(jnp.float32).reshape(
                    block_rows // 8, 8, num_classes),
                axis=0)                                               # (8, C): VPU adds only
            acc_ref[...] += part

        if needs_row_mask:
            # Only blocks that actually contain rows >= N pay for the row mask.
            block_has_invalid_rows = block_start + block_rows > total_rows

            @pl.when(jnp.logical_not(block_has_invalid_rows))
            def _full_block():
                _accumulate(sel)

            @pl.when(block_has_invalid_rows)
            def _padded_block():
                row = jax.lax.broadcasted_iota(
                    jnp.int32, (block_rows, num_classes), 0)
                _accumulate(sel & ((block_start + row) < total_rows))
        else:
            _accumulate(sel)

        @pl.when(j == blocks_per_core - 1)
        def _finalize():
            # Dump the per-core per-lane/sublane partial sums; the wrapper does
            # the single cross-lane reduce and the (-1/N) scale.
            out_ref[...] = acc_ref[...].reshape(1, 8, num_classes)

    return kernel


@functools.partial(jax.jit, static_argnames=("block_rows",))
def nll_loss_pallas(pred, target, block_rows=None):
    """pred: (N, C) log-probabilities (f32 or bf16), target: (N,) int labels."""
    n, c = pred.shape
    target2d = target.astype(jnp.int32).reshape(n, 1)

    if block_rows is None:
        block_rows = _auto_block_rows(n, c, jnp.dtype(pred.dtype).itemsize)
    block_rows = max(8, (int(block_rows) // 8) * 8)

    n_blocks = -(-n // block_rows)                        # real row blocks
    blocks_per_core = -(-n_blocks // _CORE_SPLIT)
    needs_row_mask = (_CORE_SPLIT * blocks_per_core * block_rows) != n
    max_block = n_blocks - 1

    def row_block_map(i, j):
        # Clamp phantom blocks (core-split / cdiv padding) onto the last real
        # block; their rows are >= N so the in-kernel mask zeroes them out.
        return (jnp.minimum(i * blocks_per_core + j, max_block), 0)

    kernel = _make_nll_kernel(n, block_rows, c, needs_row_mask)

    partials = pl.pallas_call(
        kernel,
        out_shape=jax.ShapeDtypeStruct((_CORE_SPLIT, 8, c), jnp.float32),
        grid_spec=pltpu.PrefetchScalarGridSpec(
            num_scalar_prefetch=0,
            grid=(_CORE_SPLIT, blocks_per_core),
            in_specs=[
                pl.BlockSpec((block_rows, c), row_block_map),
                pl.BlockSpec((block_rows, 1), row_block_map),
            ],
            out_specs=pl.BlockSpec((1, 8, c), lambda i, j: (i, 0, 0)),
            scratch_shapes=[
                pltpu.VMEM((8, c), jnp.float32),            # widened accumulator (1 vreg)
                pltpu.VMEM((block_rows, c), jnp.int32),      # loop-invariant lane iota
            ],
        ),
        compiler_params=pltpu.CompilerParams(
            dimension_semantics=("parallel", "arbitrary"),
            vmem_limit_bytes=_VMEM_LIMIT_BYTES,
        ),
    )(pred, target2d)

    # Single cross-lane/sublane reduce of the per-core partials + mean/negate.
    return jnp.sum(partials) * (-1.0 / n)


def get_loss_forward(pred, target, trans_feat=None, block_rows=None):
    # trans_feat is accepted (to mirror the PyTorch signature) but unused.
    return nll_loss_pallas(pred, target, block_rows=block_rows)


if __name__ == "__main__":
    key = jax.random.PRNGKey(0)
    k1, k2, k3, k4 = jax.random.split(key, 4)

    # Small PointNet-style classifier shapes: 40 classes.
    N, C = 32, 40
    logits = jax.random.normal(k1, (N, C), dtype=jnp.float32)
    pred = jax.nn.log_softmax(logits, axis=-1)
    target = jax.random.randint(k2, (N,), 0, C, dtype=jnp.int32)
    trans_feat = jnp.zeros((N, 3, 3), dtype=jnp.float32)  # unused, like the module

    # Small row block: 4 blocks split 2-per-core; no row mask needed (32 % 8 == 0).
    loss = get_loss_forward(pred, target, trans_feat, block_rows=8)
    loss = jax.block_until_ready(loss)
    ref = -jnp.mean(pred[jnp.arange(N), target])
    assert jnp.allclose(loss, ref, atol=1e-6, rtol=1e-6), (loss, ref)

    # Non-multiple N exercises the pl.when-gated padded-block row mask.
    N2 = 30
    logits2 = jax.random.normal(k3, (N2, C), dtype=jnp.float32)
    pred2 = jax.nn.log_softmax(logits2, axis=-1)
    target2 = jax.random.randint(k4, (N2,), 0, C, dtype=jnp.int32)
    loss2 = get_loss_forward(pred2, target2, trans_feat, block_rows=8)
    loss2 = jax.block_until_ready(loss2)
    ref2 = -jnp.mean(pred2[jnp.arange(N2), target2])
    assert jnp.allclose(loss2, ref2, atol=1e-6, rtol=1e-6), (loss2, ref2)

    # Auto block size: a single real block, so core 1's phantom block exercises
    # the clamped index_map + fully-masked path.
    loss3 = get_loss_forward(pred, target, trans_feat)
    loss3 = jax.block_until_ready(loss3)
    assert jnp.allclose(loss3, ref, atol=1e-6, rtol=1e-6), (loss3, ref)

    print("KERNEL_OK")
</pallas_src>

<mosaic_0001>
module attributes {stable_mosaic.version = 11 : i64} {
  func.func @kernel(%arg0: i32, %arg1: i32, %arg2: memref<8x40xf32, #tpu.memory_space<vmem>>, %arg3: memref<8x1xi32, #tpu.memory_space<vmem>>, %arg4: memref<1x8x40xf32, #tpu.memory_space<vmem>>, %arg5: memref<8x40xf32, #tpu.memory_space<vmem>>, %arg6: memref<8x40xi32, #tpu.memory_space<vmem>>) attributes {dimension_semantics = [#tpu.dimension_semantics<parallel>, #tpu.dimension_semantics<arbitrary>], iteration_bounds = array<i64: 2, 2>, scalar_prefetch = 0 : i64, scratch_operands = 2 : i64, tpu.core_type = #tpu.core_type<tc>, window_params = [{transform_indices = @transform_0, window_bounds = array<i64: 8, 40>}, {transform_indices = @transform_1, window_bounds = array<i64: 8, 1>}, {transform_indices = @transform_2, window_bounds = array<i64: 1, 8, 40>}]} {
    %c0_i32 = arith.constant 0 : i32
    %0 = arith.cmpi eq, %arg1, %c0_i32 : i32
    %1 = arith.extui %0 : i1 to i32
    %c0_i32_0 = arith.constant 0 : i32
    %2 = arith.cmpi ne, %1, %c0_i32_0 : i32
    scf.if %2 {
      %cst_12 = arith.constant 0.000000e+00 : f32
      %18 = vector.broadcast %cst_12 : f32 to vector<8x40xf32>
      %c0_13 = arith.constant 0 : index
      %c0_14 = arith.constant 0 : index
      %19 = vector.load %arg5[%c0_13, %c0_14] : memref<8x40xf32, #tpu.memory_space<vmem>>, vector<8x40xf32>
      tpu.vector_store %arg5[%c0_13, %c0_14], %18 {strides = array<i32>} : memref<8x40xf32, #tpu.memory_space<vmem>>, vector<8x40xf32>,
      %20 = tpu.iota {dimensions = array<i32: 1>} : vector<8x40xi32>
      %c0_15 = arith.constant 0 : index
      %c0_16 = arith.constant 0 : index
      %21 = vector.load %arg6[%c0_15, %c0_16] : memref<8x40xi32, #tpu.memory_space<vmem>>, vector<8x40xi32>
      tpu.vector_store %arg6[%c0_15, %c0_16], %20 {strides = array<i32>} : memref<8x40xi32, #tpu.memory_space<vmem>>, vector<8x40xi32>,
    } else {
    }
    %c0 = arith.constant 0 : index
    %c0_1 = arith.constant 0 : index
    %3 = vector.load %arg2[%c0, %c0_1] : memref<8x40xf32, #tpu.memory_space<vmem>>, vector<8x40xf32>
    %c0_2 = arith.constant 0 : index
    %c0_3 = arith.constant 0 : index
    %4 = vector.load %arg3[%c0_2, %c0_3] : memref<8x1xi32, #tpu.memory_space<vmem>>, vector<8x1xi32>
    %c0_4 = arith.constant 0 : index
    %c0_5 = arith.constant 0 : index
    %5 = vector.load %arg6[%c0_4, %c0_5] : memref<8x40xi32, #tpu.memory_space<vmem>>, vector<8x40xi32>
    %6 = vector.broadcast %4 : vector<8x1xi32> to vector<8x40xi32>
    %7 = arith.cmpi eq, %5, %6 : vector<8x40xi32>
    %cst = arith.constant 0.000000e+00 : f32
    %8 = vector.broadcast %cst : f32 to vector<8x40xf32>
    %9 = arith.select %7, %3, %8 : vector<8x40xi1>, vector<8x40xf32>
    %10 = vector.shape_cast %9 : vector<8x40xf32> to vector<1x8x40xf32>
    %cst_6 = arith.constant dense<0.000000e+00> : vector<8x40xf32>
    %11 = vector.multi_reduction <add>, %10, %cst_6 [0] : vector<1x8x40xf32> to vector<8x40xf32>
    %c0_7 = arith.constant 0 : index
    %c0_8 = arith.constant 0 : index
    %12 = vector.load %arg5[%c0_7, %c0_8] : memref<8x40xf32, #tpu.memory_space<vmem>>, vector<8x40xf32>
    %13 = arith.addf %12, %11 : vector<8x40xf32>
    %c0_9 = arith.constant 0 : index
    %c0_10 = arith.constant 0 : index
    %14 = vector.load %arg5[%c0_9, %c0_10] : memref<8x40xf32, #tpu.memory_space<vmem>>, vector<8x40xf32>
    tpu.vector_store %arg5[%c0_9, %c0_10], %13 {strides = array<i32>} : memref<8x40xf32, #tpu.memory_space<vmem>>, vector<8x40xf32>,
    %c1_i32 = arith.constant 1 : i32
    %15 = arith.cmpi eq, %arg1, %c1_i32 : i32
    %16 = arith.extui %15 : i1 to i32
    %c0_i32_11 = arith.constant 0 : i32
    %17 = arith.cmpi ne, %16, %c0_i32_11 : i32
    scf.if %17 {
      %c0_12 = arith.constant 0 : index
      %c0_13 = arith.constant 0 : index
      %18 = vector.load %arg5[%c0_12, %c0_13] : memref<8x40xf32, #tpu.memory_space<vmem>>, vector<8x40xf32>
      %19 = vector.shape_cast %18 : vector<8x40xf32> to vector<1x8x40xf32>
      %c0_14 = arith.constant 0 : index
      %c0_15 = arith.constant 0 : index
      %c0_16 = arith.constant 0 : index
      %20 = vector.load %arg4[%c0_14, %c0_15, %c0_16] : memref<1x8x40xf32, #tpu.memory_space<vmem>>, vector<1x8x40xf32>
      tpu.vector_store %arg4[%c0_14, %c0_15, %c0_16], %19 {strides = array<i32>} : memref<1x8x40xf32, #tpu.memory_space<vmem>>, vector<1x8x40xf32>,
    } else {
    }
    return
  }
  func.func @transform_0(%arg0: i32, %arg1: i32) -> (i32, i32) {
    %c2_i32 = arith.constant 2 : i32
    %0 = arith.muli %arg0, %c2_i32 : i32
    %1 = arith.addi %0, %arg1 : i32
    %c3_i32 = arith.constant 3 : i32
    %2 = arith.minsi %1, %c3_i32 : i32
    %c0_i32 = arith.constant 0 : i32
    %c0_i32_0 = arith.constant 0 : i32
    return %2, %c0_i32 : i32, i32
  }
  func.func @transform_1(%arg0: i32, %arg1: i32) -> (i32, i32) {
    %c2_i32 = arith.constant 2 : i32
    %0 = arith.muli %arg0, %c2_i32 : i32
    %1 = arith.addi %0, %arg1 : i32
    %c3_i32 = arith.constant 3 : i32
    %2 = arith.minsi %1, %c3_i32 : i32
    %c0_i32 = arith.constant 0 : i32
    %c0_i32_0 = arith.constant 0 : i32
    return %2, %c0_i32 : i32, i32
  }
  func.func @transform_2(%arg0: i32, %arg1: i32) -> (i32, i32, i32) {
    %c0_i32 = arith.constant 0 : i32
    %c0_i32_0 = arith.constant 0 : i32
    %c0_i32_1 = arith.constant 0 : i32
    return %arg0, %c0_i32, %c0_i32_0 : i32, i32, i32
  }
}

</mosaic_0001>

<llo_original>
// kernel: nll_loss_pallas.1
$region0: #{nll_loss_pallas.1}
  #allocation0 [shape = 'u32[]', space=smem, size = 0x4, offset = 0x4, fixed_abs, tag = 'smem constant byte address 0x4 - core index']
  #allocation1 [shape = 'u32[144,128]{1,0:T(1,128)}', space=vmem, size = 0x12000, scoped, tag = 'internal scratch']
  #allocation2 [shape = 'f32[8,40]{1,0:T(8,128)}', space=vmem, size = 0x1000, scoped, tag = 'scratch operand']
  #allocation3 [shape = 's32[8,40]{1,0:T(8,128)}', space=vmem, size = 0x1000, scoped, tag = 'scratch operand']
  %s0 = inlined_call_operand.vmem [shape: f32[32,40], index: 0, kind: input, shape index: {}]
  %s1 = inlined_call_operand.vmem [shape: s32[32,1], index: 1, kind: input, shape index: {}]
  %s2 = inlined_call_operand.vmem [shape: f32[2,8,40], index: 2, kind: output, shape index: {}]
  %s3 = sld [smem:[#allocation0]]
  $region49: #{nll_loss_pallas.1} parent=0
    _
  %s5 = ssub.s32 1, %s3
  %s6 = scalar_select 0, %s5, %s3
  loop: start=0, step=1, limit=6
  $region2: #{nll_loss_pallas.1} parent=0 // loop_pre_header
    _
  $region3: #{nll_loss_pallas.1} parent=0 // loop_header
    %s8 = sphi 0, %s12
    %p9 = scmp.ge.s32.totalorder %s8, 6
    %s15 = sphi 0, %s27
    %s16 = sphi 0, %s23
    %s17 = sphi 0, %s15
    %s18 = sphi 0, %s16
    %s19 = sphi 0, %s17
    %s20 = sphi 0, %s18
    %s38 = sphi 0, %s40
    %s41 = sphi 0, %s38
    %s42 = sphi 0, %s41
    %s58 = sphi 0, %s42
    %s72 = sphi 0, %s74
    %s75 = sphi 0, %s72
    %s76 = sphi 0, %s75
    %s92 = sphi 0, %s76
    %s98 = sphi 0, %s100
    %s101 = sphi 0, %s98
    %s102 = sphi 0, %s101
    %s118 = sphi 0, %s102
  $region4: #{nll_loss_pallas.1} parent=0 // loop_header_branch
    %11 = sbr.rel (%p9) target = $region8
  $region5: #{nll_loss_pallas.1} parent=0 // loop_body
    %s13 = ssub.s32 %s8, 1
    %s14 = ssub.s32 %s8, 2
    %s21 = sadd.s32 1, %s16
    %p22 = scmp.ge.s32.totalorder %s21, 2
    %s23 = scalar_select %p22, 0, %s21
    %s24 = sadd.s32 1, %s15
    %s25 = scalar_select %p22, %s24, %s15
    %p26 = scmp.ge.s32.totalorder %s25, 2
    %s27 = scalar_select %p26, 0, %s25
    %s28 = smul.u32 %s15, 2
    %s29 = sadd.s32 %s28, %s16
    %p30 = scmp.lt.s32.totalorder %s29, 3
    %s31 = scalar_select %p30, %s29, 3
    %s32 = smul.u32 %s27, 2
    %s33 = sadd.s32 %s32, %s23
    %p34 = scmp.lt.s32.totalorder %s33, 3
    %s35 = scalar_select %p34, %s33, 3
    %s36 = ssub.s32 %s31, %s35
    %p37 = scmp.eq.s32.totalorder %s36, 0
    %s39 = sadd.s32 %s38, 1
    %s40 = scalar_select %p37, %s38, %s39
    %p43 = pneg %p37
    %p44 = scmp.eq.s32.totalorder %s8, 3
    %p45 = por %p43, %p44
    %p46 = scmp.ne.s32.totalorder %s38, %s41
    %p47 = scmp.eq.s32.totalorder %s8, 0
    %p48 = por %p46, %p47
    %p49 = scmp.ne.s32.totalorder %s38, %s41
    %p50 = scmp.eq.s32.totalorder %s13, 3
    %p51 = por %p49, %p50
    %p52 = scmp.ne.s32.totalorder %s41, %s42
    %p53 = scmp.eq.s32.totalorder %s13, 0
    %p54 = por %p52, %p53
    %p55 = scmp.ne.s32.totalorder %s41, %s42
    %p56 = scmp.eq.s32.totalorder %s14, 3
    %p57 = por %p55, %p56
    %p59 = scmp.ne.s32.totalorder %s42, %s58
    %p60 = scmp.eq.s32.totalorder %s14, 0
    %p61 = por %p59, %p60
    %s62 = smul.u32 %s15, 2
    %s63 = sadd.s32 %s62, %s16
    %p64 = scmp.lt.s32.totalorder %s63, 3
    %s65 = scalar_select %p64, %s63, 3
    %s66 = smul.u32 %s27, 2
    %s67 = sadd.s32 %s66, %s23
    %p68 = scmp.lt.s32.totalorder %s67, 3
    %s69 = scalar_select %p68, %s67, 3
    %s70 = ssub.s32 %s65, %s69
    %p71 = scmp.eq.s32.totalorder %s70, 0
    %s73 = sadd.s32 %s72, 1
    %s74 = scalar_select %p71, %s72, %s73
    %p77 = pneg %p71
    %p78 = scmp.eq.s32.totalorder %s8, 3
    %p79 = por %p77, %p78
    %p80 = scmp.ne.s32.totalorder %s72, %s75
    %p81 = scmp.eq.s32.totalorder %s8, 0
    %p82 = por %p80, %p81
    %p83 = scmp.ne.s32.totalorder %s72, %s75
    %p84 = scmp.eq.s32.totalorder %s13, 3
    %p85 = por %p83, %p84
    %p86 = scmp.ne.s32.totalorder %s75, %s76
    %p87 = scmp.eq.s32.totalorder %s13, 0
    %p88 = por %p86, %p87
    %p89 = scmp.ne.s32.totalorder %s75, %s76
    %p90 = scmp.eq.s32.totalorder %s14, 3
    %p91 = por %p89, %p90
    %p93 = scmp.ne.s32.totalorder %s76, %s92
    %p94 = scmp.eq.s32.totalorder %s14, 0
    %p95 = por %p93, %p94
    %s96 = ssub.s32 %s15, %s27
    %p97 = scmp.eq.s32.totalorder %s96, 0
    %s99 = sadd.s32 %s98, 1
    %s100 = scalar_select %p97, %s98, %s99
    %p103 = pneg %p97
    %p104 = scmp.eq.s32.totalorder %s8, 3
    %p105 = por %p103, %p104
    %p106 = scmp.ne.s32.totalorder %s98, %s101
    %p107 = scmp.eq.s32.totalorder %s8, 0
    %p108 = por %p106, %p107
    %p109 = scmp.ne.s32.totalorder %s98, %s101
    %p110 = scmp.eq.s32.totalorder %s13, 3
    %p111 = por %p109, %p110
    %p112 = scmp.ne.s32.totalorder %s101, %s102
    %p113 = scmp.eq.s32.totalorder %s13, 0
    %p114 = por %p112, %p113
    %p115 = scmp.ne.s32.totalorder %s101, %s102
    %p116 = scmp.eq.s32.totalorder %s14, 3
    %p117 = por %p115, %p116
    %p119 = scmp.ne.s32.totalorder %s102, %s118
    %p120 = scmp.eq.s32.totalorder %s14, 0
    %p121 = por %p119, %p120
    %p122 = scmp.le.s32.totalorder 1, %s8
    %p123 = scmp.lt.s32.totalorder %s8, 5
    %p124 = pnand %p122, %p123
    %p125 = pneg %p124
    // Predicated region
    $region9: #{nll_loss_pallas.1} parent=5 // pred_check
      _
    $region10: #{nll_loss_pallas.1} parent=5 // pred_check_branch
      %127 = sbr.rel (%p124) target = $region12
    $region11: #{nll_loss_pallas.1} parent=5 // pred_region
      %s128 = ssub.s32 %s8, 1
    $region12: #{nll_loss_pallas.1} parent=5 // pred_fallthru
      _
    %p129 = scmp.lt.s32.totalorder %s8, 4
    // Predicated region
    $region13: #{nll_loss_pallas.1} parent=5 // pred_check
      %p130 = pneg %p129
    $region14: #{nll_loss_pallas.1} parent=5 // pred_check_branch
      %132 = sbr.rel (%p130) target = $region16
    $region15: #{nll_loss_pallas.1} parent=5 // pred_region
      // Predicated region
      $region17: #{nll_loss_pallas.1} parent=15 // pred_check
        %p133 = pneg %p48
      $region18: #{nll_loss_pallas.1} parent=15 // pred_check_branch
        %135 = sbr.rel (%p133) target = $region20
      $region19: #{nll_loss_pallas.1} parent=15 // pred_region
        %s136 = smul.u32 %s15, 2
        %s137 = sadd.s32 %s136, %s16
        %p138 = scmp.lt.s32.totalorder %s137, 3
        %s139 = scalar_select %p138, %s137, 3
        %p140 = scmp.lt.s32.totalorder %s139, 3
        %s141 = scalar_select %p140, %s139, 3
        %s142 = smul.addr %s141, 8
        %s143 = scalar_lea.vmem %s0, %s142
        %s144 = smul.u32 %s15, 2
        %s145 = sadd.s32 %s144, %s16
        %p146 = scmp.lt.s32.totalorder %s145, 3
        %s147 = scalar_select %p146, %s145, 3
      $region20: #{nll_loss_pallas.1} parent=15 // pred_fallthru
        _
      // Predicated region
      $region21: #{nll_loss_pallas.1} parent=15 // pred_check
        %p148 = pneg %p82
      $region22: #{nll_loss_pallas.1} parent=15 // pred_check_branch
        %150 = sbr.rel (%p148) target = $region24
      $region23: #{nll_loss_pallas.1} parent=15 // pred_region
        %s151 = smul.u32 %s15, 2
        %s152 = sadd.s32 %s151, %s16
        %p153 = scmp.lt.s32.totalorder %s152, 3
        %s154 = scalar_select %p153, %s152, 3
        %p155 = scmp.lt.s32.totalorder %s154, 3
        %s156 = scalar_select %p155, %s154, 3
        %s157 = smul.addr %s156, 8
        %s158 = scalar_lea.vmem %s1, %s157
        %s159 = smul.u32 %s15, 2
        %s160 = sadd.s32 %s159, %s16
        %p161 = scmp.lt.s32.totalorder %s160, 3
        %s162 = scalar_select %p161, %s160, 3
      $region24: #{nll_loss_pallas.1} parent=15 // pred_fallthru
        _
    $region16: #{nll_loss_pallas.1} parent=5 // pred_fallthru
      _
    %p163 = scmp.le.s32.totalorder 1, %s8
    %p164 = scmp.lt.s32.totalorder %s8, 5
    %p165 = pnand %p163, %p164
    %p166 = pneg %p165
    // Predicated region
    $region25: #{nll_loss_pallas.1} parent=5 // pred_check
      _
    $region26: #{nll_loss_pallas.1} parent=5 // pred_check_branch
      %168 = sbr.rel (%p165) target = $region28
    $region27: #{nll_loss_pallas.1} parent=5 // pred_region
      %s169 = ssub.s32 %s8, 1
      %s170 = smul.u32 %s17, 2
      %s171 = sadd.s32 %s170, %s18
      %p172 = scmp.lt.s32.totalorder %s171, 3
      %s173 = scalar_select %p172, %s171, 3
      %p174 = scmp.lt.s32.totalorder %s173, 3
      %s175 = scalar_select %p174, %s173, 3
      %s176 = smul.addr %s175, 8
      %s177 = scalar_lea.vmem %s0, %s176
      %p178 = pneg %p54
      %p179 = pneg %p51
      %s180 = smul.u32 %s17, 2
      %s181 = sadd.s32 %s180, %s18
      %p182 = scmp.lt.s32.totalorder %s181, 3
      %s183 = scalar_select %p182, %s181, 3
      %p184 = scmp.lt.s32.totalorder %s183, 3
      %s185 = scalar_select %p184, %s183, 3
      %s186 = smul.addr %s185, 8
      %s187 = scalar_lea.vmem %s1, %s186
      %p188 = pneg %p88
      %p189 = pneg %p85
      %p190 = pneg %p114
      %p191 = pneg %p111
      %p192 = scmp.lt.s32.totalorder %s17, 1
      %s193 = scalar_select %p192, %s17, 1
      %s194 = smul.addr %s193, 8
      %s195 = scalar_lea.vmem %s2, %s194
      %s196 = smul.u32 %s17, 2
      %s197 = sadd.s32 %s196, %s18
      %p198 = scmp.lt.s32.totalorder %s197, 3
      %s199 = scalar_select %p198, %s197, 3
      %p200 = scmp.lt.s32.totalorder %s199, 3
      %s201 = scalar_select %p200, %s199, 3
      %s202 = smul.addr %s201, 8
      %s203 = scalar_lea.vmem %s0, %s202
      %s204 = smul.u32 %s17, 2
      %s205 = sadd.s32 %s204, %s18
      %p206 = scmp.lt.s32.totalorder %s205, 3
      %s207 = scalar_select %p206, %s205, 3
      %s208 = smul.u32 %s17, 2
      %s209 = sadd.s32 %s208, %s18
      %p210 = scmp.lt.s32.totalorder %s209, 3
      %s211 = scalar_select %p210, %s209, 3
      %p212 = scmp.lt.s32.totalorder %s211, 3
      %s213 = scalar_select %p212, %s211, 3
      %s214 = smul.addr %s213, 8
      %s215 = scalar_lea.vmem %s1, %s214
      %s216 = smul.u32 %s17, 2
      %s217 = sadd.s32 %s216, %s18
      %p218 = scmp.lt.s32.totalorder %s217, 3
      %s219 = scalar_select %p218, %s217, 3
      %p220 = scmp.lt.s32.totalorder %s17, 1
      %s221 = scalar_select %p220, %s17, 1
      %s222 = smul.addr %s221, 8
      %s223 = scalar_lea.vmem %s2, %s222
      %p224 = scmp.eq.s32.totalorder %s18, 0
      // Predicated region
      $region29: #{nll_loss_pallas.1} parent=27 // pred_check
        %p225 = pneg %p224
      $region30: #{nll_loss_pallas.1} parent=27 // pred_check_branch
        %227 = sbr.rel (%p225) target = $region32
      $region31: #{nll_loss_pallas.1} parent=27 // pred_region
        %vm228 = vcmask 326656
        %229 = vst.msk [vmem:[#allocation2] sm:$0xff] %vm228, 0.0
        %v230 = vlaneseq
        %v231 = vand.u32 %v230, 127
        %232 = vst.msk [vmem:[#allocation3] sm:$0xff] %vm228, %v231
      $region32: #{nll_loss_pallas.1} parent=27 // pred_fallthru
        _
      %v233 = vld [vmem:[%s203] sm:$0xff]
      %v234 = vld [vmem:[%s215] sm:$0xff]
      %v235 = vld [vmem:[#allocation3] sm:$0xff]
      %236 = vset.pattern.permute.xlu0 0
      %237 = vperm.xlu0 %236, %v234
      %v238 = vpop.permute.xlu0 %237
      %vm239 = vcmp.eq.s32.totalorder %v235, %v238
      %v240 = vsel %vm239, %v233, 0.0
      %v241 = vadd.f32 %v240, 0.0
      %v242 = vld [vmem:[#allocation2] sm:$0xff]
      %v243 = vadd.f32 %v242, %v241
      %vm244 = vcmask 326656
      %245 = vst.msk [vmem:[#allocation2] sm:$0xff] %vm244, %v243
      %p246 = scmp.eq.s32.totalorder %s18, 1
      // Predicated region
      $region33: #{nll_loss_pallas.1} parent=27 // pred_check
        %p247 = pneg %p246
      $region34: #{nll_loss_pallas.1} parent=27 // pred_check_branch
        %249 = sbr.rel (%p247) target = $region36
      $region35: #{nll_loss_pallas.1} parent=27 // pred_region
        %v250 = vld [vmem:[#allocation2] sm:$0xff]
        %251 = vst.msk [vmem:[%s223] sm:$0xff] %vm244, %v250
      $region36: #{nll_loss_pallas.1} parent=27 // pred_fallthru
        _
      %p252 = scmp.lt.s32.totalorder %s17, 1
      %s253 = scalar_select %p252, %s17, 1
      %s254 = smul.addr %s253, 8
      %s255 = scalar_lea.vmem %s2, %s254
      // Predicated region
      $region37: #{nll_loss_pallas.1} parent=27 // pred_check
        %p256 = pneg %p111
      $region38: #{nll_loss_pallas.1} parent=27 // pred_check_branch
        %258 = sbr.rel (%p256) target = $region40
      $region39: #{nll_loss_pallas.1} parent=27 // pred_region
        _
      $region40: #{nll_loss_pallas.1} parent=27 // pred_fallthru
        _
    $region28: #{nll_loss_pallas.1} parent=5 // pred_fallthru
      _
    %p259 = scmp.le.s32.totalorder 2, %s8
    // Predicated region
    $region41: #{nll_loss_pallas.1} parent=5 // pred_check
      %p260 = pneg %p259
    $region42: #{nll_loss_pallas.1} parent=5 // pred_check_branch
      %262 = sbr.rel (%p260) target = $region44
    $region43: #{nll_loss_pallas.1} parent=5 // pred_region
      %s263 = ssub.s32 %s8, 2
      // Predicated region
      $region45: #{nll_loss_pallas.1} parent=43 // pred_check
        %p264 = pneg %p117
      $region46: #{nll_loss_pallas.1} parent=43 // pred_check_branch
        %266 = sbr.rel (%p264) target = $region48
      $region47: #{nll_loss_pallas.1} parent=43 // pred_region
        %p267 = scmp.lt.s32.totalorder %s19, 1
        %s268 = scalar_select %p267, %s19, 1
        %s269 = smul.addr %s268, 8
        %s270 = scalar_lea.vmem %s2, %s269
      $region48: #{nll_loss_pallas.1} parent=43 // pred_fallthru
        _
    $region44: #{nll_loss_pallas.1} parent=5 // pred_fallthru
      _
  $region6: #{nll_loss_pallas.1} parent=0 // loop_footer
    %s12 = sadd.s32 1, %s8
  $region7: #{nll_loss_pallas.1} parent=0 // loop_footer_branch
    %7 = sbr.rel target = $region3
  $region8: #{nll_loss_pallas.1} parent=0 // loop_exit
    _

</llo_original>
